<compile_context>
chip_gen: v6e
topology: v6e:2x2x1
jax: 0.10.0
libtpu: 0.0.40
codegen_flags: <defaults>
</compile_context>

<pallas_src>
import jax
import jax.numpy as jnp
from jax.experimental import pallas as pl
from jax.experimental.pallas import tpu as pltpu

_LANE = 128


def _avgpool2x2_kernel(x_ref, o_ref):
    # x_ref: (H, W, TL) VMEM tile, lane axis = channels; o_ref: (H-1, W-1, TL)
    H, W, _ = x_ref.shape
    top = x_ref[pl.ds(0, H - 1)]            # (H-1, W, TL)
    bot = x_ref[pl.ds(1, H - 1)]            # (H-1, W, TL)
    rows = top + bot                        # separable: vertical pair-sum first
    left = rows[:, : W - 1, :]              # (H-1, W-1, TL)
    right = rows[:, 1:, :]                  # (H-1, W-1, TL)
    o_ref[...] = ((left + right) * 0.25).astype(o_ref.dtype)


def _choose_lane_tile(L, H, W, Ho, Wo, itemsize):
    """Largest lane tile (multiple of 128, divides L) whose double-buffered
    in+out tiles fit a conservative VMEM budget; prefer >=2 grid steps."""
    per_lane = (H * W + Ho * Wo) * itemsize * 2   # 2x for double buffering
    budget = 12 * 1024 * 1024                     # fits v5e/v6e/v7x scoped defaults
    m = L // _LANE
    g_best = 1
    for g in range(1, m + 1):
        if m % g == 0 and _LANE * g * per_lane <= budget:
            g_best = g
    if m > 1 and g_best == m:
        # keep at least 2 grid steps so both v7x TensorCores get a share
        for g in range(m - 1, 0, -1):
            if m % g == 0:
                g_best = g
                break
    return _LANE * g_best


def avgpool2d_2x2_s1(x):
    """x: (N, C, H, W) float array. Returns (N, C, H-1, W-1)."""
    N, C, H, W = x.shape
    Ho, Wo = H - 1, W - 1
    NC = N * C

    # Channel-last, lane-dense layout: (H, W, L) with L = NC padded to mult of 128.
    x_cl = jnp.transpose(x.reshape(NC, H, W), (1, 2, 0))      # (H, W, NC)
    L = ((NC + _LANE - 1) // _LANE) * _LANE
    L = max(L, _LANE)
    if L != NC:
        x_cl = jnp.pad(x_cl, ((0, 0), (0, 0), (0, L - NC)))

    itemsize = jnp.dtype(x.dtype).itemsize
    TL = _choose_lane_tile(L, H, W, Ho, Wo, itemsize)
    grid = (L // TL,)
    # TODO(synk): for very large H*W (full (H,W,128) slab no longer fits VMEM),
    # add H-tiling with a 1-row halo via the index_map instead of full-slab blocks.

    out_cl = pl.pallas_call(
        _avgpool2x2_kernel,
        out_shape=jax.ShapeDtypeStruct((Ho, Wo, L), x.dtype),
        grid_spec=pltpu.PrefetchScalarGridSpec(
            num_scalar_prefetch=0,
            grid=grid,
            in_specs=[pl.BlockSpec((H, W, TL), lambda i: (0, 0, i))],
            out_specs=pl.BlockSpec((Ho, Wo, TL), lambda i: (0, 0, i)),
        ),
        compiler_params=pltpu.CompilerParams(
            dimension_semantics=("parallel",),
        ),
    )(x_cl)

    out = jnp.transpose(out_cl[:, :, :NC], (2, 0, 1)).reshape(N, C, Ho, Wo)
    return out


class NeuralNet:
    """JAX/Pallas equivalent of the PyTorch module (no learnable params)."""

    def __call__(self, x):
        return avgpool2d_2x2_s1(x)


if __name__ == "__main__":
    key = jax.random.PRNGKey(0)
    x = jax.random.normal(key, (2, 4, 16, 16), dtype=jnp.float32)

    model = NeuralNet()
    y = model(x)
    y = jax.block_until_ready(y)

    # Sanity check against a pure-JAX reference of AvgPool2d(k=2, s=1, p=0)
    ref = 0.25 * (x[:, :, :-1, :-1] + x[:, :, 1:, :-1]
                  + x[:, :, :-1, 1:] + x[:, :, 1:, 1:])
    assert y.shape == (2, 4, 15, 15), y.shape
    assert jnp.allclose(y, ref, atol=1e-6, rtol=1e-6)

    print("KERNEL_OK")
</pallas_src>

<mosaic_0001>
module attributes {stable_mosaic.version = 11 : i64} {
  func.func @_avgpool2x2_kernel(%arg0: i32, %arg1: memref<16x16x128xf32, #tpu.memory_space<vmem>>, %arg2: memref<15x15x128xf32, #tpu.memory_space<vmem>>) attributes {dimension_semantics = [#tpu.dimension_semantics<parallel>], iteration_bounds = array<i64: 1>, scalar_prefetch = 0 : i64, scratch_operands = 0 : i64, tpu.core_type = #tpu.core_type<tc>, window_params = [{transform_indices = @transform_0, window_bounds = array<i64: 16, 16, 128>}, {transform_indices = @transform_1, window_bounds = array<i64: 15, 15, 128>}]} {
    %c0 = arith.constant 0 : index
    %c0_0 = arith.constant 0 : index
    %c0_1 = arith.constant 0 : index
    %0 = vector.load %arg1[%c0, %c0_0, %c0_1] : memref<16x16x128xf32, #tpu.memory_space<vmem>>, vector<15x16x128xf32>
    %c1 = arith.constant 1 : index
    %c0_2 = arith.constant 0 : index
    %c0_3 = arith.constant 0 : index
    %1 = vector.load %arg1[%c1, %c0_2, %c0_3] : memref<16x16x128xf32, #tpu.memory_space<vmem>>, vector<15x16x128xf32>
    %2 = arith.addf %0, %1 : vector<15x16x128xf32>
    %3 = vector.extract_strided_slice %2 {offsets = [0, 0, 0], sizes = [15, 15, 128], strides = [1, 1, 1]} : vector<15x16x128xf32> to vector<15x15x128xf32>
    %4 = vector.extract_strided_slice %2 {offsets = [0, 1, 0], sizes = [15, 15, 128], strides = [1, 1, 1]} : vector<15x16x128xf32> to vector<15x15x128xf32>
    %5 = arith.addf %3, %4 : vector<15x15x128xf32>
    %cst = arith.constant 2.500000e-01 : f32
    %6 = vector.broadcast %cst : f32 to vector<15x15x128xf32>
    %7 = arith.mulf %5, %6 : vector<15x15x128xf32>
    %c0_4 = arith.constant 0 : index
    %c0_5 = arith.constant 0 : index
    %c0_6 = arith.constant 0 : index
    %8 = vector.load %arg2[%c0_4, %c0_5, %c0_6] : memref<15x15x128xf32, #tpu.memory_space<vmem>>, vector<15x15x128xf32>
    tpu.vector_store %arg2[%c0_4, %c0_5, %c0_6], %7 {strides = array<i32>} : memref<15x15x128xf32, #tpu.memory_space<vmem>>, vector<15x15x128xf32>,
    return
  }
  func.func @transform_0(%arg0: i32) -> (i32, i32, i32) {
    %c0_i32 = arith.constant 0 : i32
    %c0_i32_0 = arith.constant 0 : i32
    %c0_i32_1 = arith.constant 0 : i32
    return %c0_i32, %c0_i32_0, %arg0 : i32, i32, i32
  }
  func.func @transform_1(%arg0: i32) -> (i32, i32, i32) {
    %c0_i32 = arith.constant 0 : i32
    %c0_i32_0 = arith.constant 0 : i32
    %c0_i32_1 = arith.constant 0 : i32
    return %c0_i32, %c0_i32_0, %arg0 : i32, i32, i32
  }
}

</mosaic_0001>

<llo_original>
// kernel: tpu_custom_call.1
$region0: #{tpu_custom_call.1}
  #allocation0 [shape = 'u32[]', space=smem, size = 0x4, offset = 0x4, fixed_abs, tag = 'smem constant byte address 0x4 - core index']
  #allocation1 [shape = 'u32[144,128]{1,0:T(1,128)}', space=vmem, size = 0x12000, scoped, tag = 'internal scratch']
  %s0 = inlined_call_operand.hbm [shape: f32[16,16,128], index: 0, kind: input, shape index: {}]
  %s1 = inlined_call_operand.hbm [shape: f32[15,15,128], index: 1, kind: output, shape index: {}]
  %s2 = sld [smem:[#allocation0]]
  $region18: #{tpu_custom_call.1} parent=0
    _
  %s4 = ssub.s32 1, %s2
  %s5 = scalar_select 0, %s4, %s2
  $region1: #{tpu_custom_call.1} parent=0
    #allocation2 [shape = 'u8[131072]{0}', space=vmem, size = 0x20000, scoped, tag = 'input window, operand 0, single buffered']
    #allocation3 [shape = 's32[1]{0}', space=sflag, size = 0x4, scoped, tag = 'scoped memory for tpu_custom_call.1']
    #allocation4 [shape = 's32[1]{0}', space=sflag, size = 0x4, scoped, tag = 'scoped memory for tpu_custom_call.1']
    #allocation5 [shape = 'u8[122880]{0}', space=vmem, size = 0x1e000, scoped, tag = 'output window, operand 0, single buffered']
    %6 = vsyncpa [#allocation3], 0
    %7 = vsyncpa [#allocation4], 0
    // Predicated region
    $region2: #{tpu_custom_call.1} parent=1 // pred_check
      _
    $region3: #{tpu_custom_call.1} parent=1 // pred_check_branch
      %9 = sbr.rel (0) target = $region5
    $region4: #{tpu_custom_call.1} parent=1 // pred_region
      %s11 = ssub.s32 4096, 4096
      %12 = vsyncadd [#allocation3], %s11
      %s13 = sshll.u32 [#allocation2], 4
      %s14 = int_to_ptr.vmem [resolvable:$true] %s13
      %19 = dma.hbm_to_vmem [thread:$0]  %s0, 4096, %s14, [#allocation3], 128, 128, 8
    $region5: #{tpu_custom_call.1} parent=1 // pred_fallthru
      _
    // Predicated region
    $region6: #{tpu_custom_call.1} parent=1 // pred_check
      _
    $region7: #{tpu_custom_call.1} parent=1 // pred_check_branch
      %21 = sbr.rel (0) target = $region9
    $region8: #{tpu_custom_call.1} parent=1 // pred_region
      %22 = dma.done [#allocation3], 4096
    $region9: #{tpu_custom_call.1} parent=1 // pred_fallthru
      _
    %v23 = vld [vmem:[#allocation2] sm:$0xff]
    %v24 = vld [vmem:[#allocation2 + $0x8] sm:$0xff]
    %v25 = vld [vmem:[#allocation2 + $0x10] sm:$0xff]
    %v26 = vld [vmem:[#allocation2 + $0x18] sm:$0xff]
    %v27 = vld [vmem:[#allocation2 + $0x20] sm:$0xff]
    %v28 = vld [vmem:[#allocation2 + $0x28] sm:$0xff]
    %v29 = vld [vmem:[#allocation2 + $0x30] sm:$0xff]
    %v30 = vld [vmem:[#allocation2 + $0x38] sm:$0xff]
    %v31 = vld [vmem:[#allocation2 + $0x40] sm:$0xff]
    %v32 = vld [vmem:[#allocation2 + $0x48] sm:$0xff]
    %v33 = vld [vmem:[#allocation2 + $0x50] sm:$0xff]
    %v34 = vld [vmem:[#allocation2 + $0x58] sm:$0xff]
    %v35 = vld [vmem:[#allocation2 + $0x60] sm:$0xff]
    %v36 = vld [vmem:[#allocation2 + $0x68] sm:$0xff]
    %v37 = vld [vmem:[#allocation2 + $0x70] sm:$0xff]
    %v38 = vld [vmem:[#allocation2 + $0x78] sm:$0xff]
    %v39 = vld [vmem:[#allocation2 + $0x80] sm:$0xff]
    %v40 = vld [vmem:[#allocation2 + $0x88] sm:$0xff]
    %v41 = vld [vmem:[#allocation2 + $0x90] sm:$0xff]
    %v42 = vld [vmem:[#allocation2 + $0x98] sm:$0xff]
    %v43 = vld [vmem:[#allocation2 + $0xa0] sm:$0xff]
    %v44 = vld [vmem:[#allocation2 + $0xa8] sm:$0xff]
    %v45 = vld [vmem:[#allocation2 + $0xb0] sm:$0xff]
    %v46 = vld [vmem:[#allocation2 + $0xb8] sm:$0xff]
    %v47 = vld [vmem:[#allocation2 + $0xc0] sm:$0xff]
    %v48 = vld [vmem:[#allocation2 + $0xc8] sm:$0xff]
    %v49 = vld [vmem:[#allocation2 + $0xd0] sm:$0xff]
    %v50 = vld [vmem:[#allocation2 + $0xd8] sm:$0xff]
    %v51 = vld [vmem:[#allocation2 + $0xe0] sm:$0xff]
    %v52 = vld [vmem:[#allocation2 + $0xe8] sm:$0xff]
    %s53 = scalar_lea.vmem [#allocation2], 16
    %v54 = vld [vmem:[%s53] sm:$0xff]
    %v55 = vld [vmem:[%s53 + $0x8] sm:$0xff]
    %v56 = vld [vmem:[%s53 + $0x10] sm:$0xff]
    %v57 = vld [vmem:[%s53 + $0x18] sm:$0xff]
    %v58 = vld [vmem:[%s53 + $0x20] sm:$0xff]
    %v59 = vld [vmem:[%s53 + $0x28] sm:$0xff]
    %v60 = vld [vmem:[%s53 + $0x30] sm:$0xff]
    %v61 = vld [vmem:[%s53 + $0x38] sm:$0xff]
    %v62 = vld [vmem:[%s53 + $0x40] sm:$0xff]
    %v63 = vld [vmem:[%s53 + $0x48] sm:$0xff]
    %v64 = vld [vmem:[%s53 + $0x50] sm:$0xff]
    %v65 = vld [vmem:[%s53 + $0x58] sm:$0xff]
    %v66 = vld [vmem:[%s53 + $0x60] sm:$0xff]
    %v67 = vld [vmem:[%s53 + $0x68] sm:$0xff]
    %v68 = vld [vmem:[%s53 + $0x70] sm:$0xff]
    %v69 = vld [vmem:[%s53 + $0x78] sm:$0xff]
    %v70 = vld [vmem:[%s53 + $0x80] sm:$0xff]
    %v71 = vld [vmem:[%s53 + $0x88] sm:$0xff]
    %v72 = vld [vmem:[%s53 + $0x90] sm:$0xff]
    %v73 = vld [vmem:[%s53 + $0x98] sm:$0xff]
    %v74 = vld [vmem:[%s53 + $0xa0] sm:$0xff]
    %v75 = vld [vmem:[%s53 + $0xa8] sm:$0xff]
    %v76 = vld [vmem:[%s53 + $0xb0] sm:$0xff]
    %v77 = vld [vmem:[%s53 + $0xb8] sm:$0xff]
    %v78 = vld [vmem:[%s53 + $0xc0] sm:$0xff]
    %v79 = vld [vmem:[%s53 + $0xc8] sm:$0xff]
    %v80 = vld [vmem:[%s53 + $0xd0] sm:$0xff]
    %v81 = vld [vmem:[%s53 + $0xd8] sm:$0xff]
    %v82 = vld [vmem:[%s53 + $0xe0] sm:$0xff]
    %v83 = vld [vmem:[%s53 + $0xe8] sm:$0xff]
    %v84 = vadd.f32 %v23, %v54
    %v85 = vadd.f32 %v24, %v55
    %v86 = vadd.f32 %v25, %v56
    %v87 = vadd.f32 %v26, %v57
    %v88 = vadd.f32 %v27, %v58
    %v89 = vadd.f32 %v28, %v59
    %v90 = vadd.f32 %v29, %v60
    %v91 = vadd.f32 %v30, %v61
    %v92 = vadd.f32 %v31, %v62
    %v93 = vadd.f32 %v32, %v63
    %v94 = vadd.f32 %v33, %v64
    %v95 = vadd.f32 %v34, %v65
    %v96 = vadd.f32 %v35, %v66
    %v97 = vadd.f32 %v36, %v67
    %v98 = vadd.f32 %v37, %v68
    %v99 = vadd.f32 %v38, %v69
    %v100 = vadd.f32 %v39, %v70
    %v101 = vadd.f32 %v40, %v71
    %v102 = vadd.f32 %v41, %v72
    %v103 = vadd.f32 %v42, %v73
    %v104 = vadd.f32 %v43, %v74
    %v105 = vadd.f32 %v44, %v75
    %v106 = vadd.f32 %v45, %v76
    %v107 = vadd.f32 %v46, %v77
    %v108 = vadd.f32 %v47, %v78
    %v109 = vadd.f32 %v48, %v79
    %v110 = vadd.f32 %v49, %v80
    %v111 = vadd.f32 %v50, %v81
    %v112 = vadd.f32 %v51, %v82
    %v113 = vadd.f32 %v52, %v83
    %vm144 = vcmask 1046528
    %v145 = vrot.slane %v84, 1
    %v146 = vrot.slane %v85, 1
    %v147 = vsel %vm144, %v145, %v146
    %v148 = vrot.slane %v86, 1
    %v149 = vrot.slane %v87, 1
    %v150 = vsel %vm144, %v148, %v149
    %v151 = vrot.slane %v88, 1
    %v152 = vrot.slane %v89, 1
    %v153 = vsel %vm144, %v151, %v152
    %v154 = vrot.slane %v90, 1
    %v155 = vrot.slane %v91, 1
    %v156 = vsel %vm144, %v154, %v155
    %v157 = vrot.slane %v92, 1
    %v158 = vrot.slane %v93, 1
    %v159 = vsel %vm144, %v157, %v158
    %v160 = vrot.slane %v94, 1
    %v161 = vrot.slane %v95, 1
    %v162 = vsel %vm144, %v160, %v161
    %v163 = vrot.slane %v96, 1
    %v164 = vrot.slane %v97, 1
    %v165 = vsel %vm144, %v163, %v164
    %v166 = vrot.slane %v98, 1
    %v167 = vrot.slane %v99, 1
    %v168 = vsel %vm144, %v166, %v167
    %v169 = vrot.slane %v100, 1
    %v170 = vrot.slane %v101, 1
    %v171 = vsel %vm144, %v169, %v170
    %v172 = vrot.slane %v102, 1
    %v173 = vrot.slane %v103, 1
    %v174 = vsel %vm144, %v172, %v173
    %v175 = vrot.slane %v104, 1
    %v176 = vrot.slane %v105, 1
    %v177 = vsel %vm144, %v175, %v176
    %v178 = vrot.slane %v106, 1
    %v179 = vrot.slane %v107, 1
    %v180 = vsel %vm144, %v178, %v179
    %v181 = vrot.slane %v108, 1
    %v182 = vrot.slane %v109, 1
    %v183 = vsel %vm144, %v181, %v182
    %v184 = vrot.slane %v110, 1
    %v185 = vrot.slane %v111, 1
    %v186 = vsel %vm144, %v184, %v185
    %v187 = vrot.slane %v112, 1
    %v188 = vrot.slane %v113, 1
    %v189 = vsel %vm144, %v187, %v188
    %v220 = vadd.f32 %v84, %v147
    %v221 = vadd.f32 %v85, %v146
    %v222 = vadd.f32 %v86, %v150
    %v223 = vadd.f32 %v87, %v149
    %v224 = vadd.f32 %v88, %v153
    %v225 = vadd.f32 %v89, %v152
    %v226 = vadd.f32 %v90, %v156
    %v227 = vadd.f32 %v91, %v155
    %v228 = vadd.f32 %v92, %v159
    %v229 = vadd.f32 %v93, %v158
    %v230 = vadd.f32 %v94, %v162
    %v231 = vadd.f32 %v95, %v161
    %v232 = vadd.f32 %v96, %v165
    %v233 = vadd.f32 %v97, %v164
    %v234 = vadd.f32 %v98, %v168
    %v235 = vadd.f32 %v99, %v167
    %v236 = vadd.f32 %v100, %v171
    %v237 = vadd.f32 %v101, %v170
    %v238 = vadd.f32 %v102, %v174
    %v239 = vadd.f32 %v103, %v173
    %v240 = vadd.f32 %v104, %v177
    %v241 = vadd.f32 %v105, %v176
    %v242 = vadd.f32 %v106, %v180
    %v243 = vadd.f32 %v107, %v179
    %v244 = vadd.f32 %v108, %v183
    %v245 = vadd.f32 %v109, %v182
    %v246 = vadd.f32 %v110, %v186
    %v247 = vadd.f32 %v111, %v185
    %v248 = vadd.f32 %v112, %v189
    %v249 = vadd.f32 %v113, %v188
    %v250 = vmul.f32 %v220, 0.25
    %v251 = vmul.f32 %v221, 0.25
    %v252 = vmul.f32 %v222, 0.25
    %v253 = vmul.f32 %v223, 0.25
    %v254 = vmul.f32 %v224, 0.25
    %v255 = vmul.f32 %v225, 0.25
    %v256 = vmul.f32 %v226, 0.25
    %v257 = vmul.f32 %v227, 0.25
    %v258 = vmul.f32 %v228, 0.25
    %v259 = vmul.f32 %v229, 0.25
    %v260 = vmul.f32 %v230, 0.25
    %v261 = vmul.f32 %v231, 0.25
    %v262 = vmul.f32 %v232, 0.25
    %v263 = vmul.f32 %v233, 0.25
    %v264 = vmul.f32 %v234, 0.25
    %v265 = vmul.f32 %v235, 0.25
    %v266 = vmul.f32 %v236, 0.25
    %v267 = vmul.f32 %v237, 0.25
    %v268 = vmul.f32 %v238, 0.25
    %v269 = vmul.f32 %v239, 0.25
    %v270 = vmul.f32 %v240, 0.25
    %v271 = vmul.f32 %v241, 0.25
    %v272 = vmul.f32 %v242, 0.25
    %v273 = vmul.f32 %v243, 0.25
    %v274 = vmul.f32 %v244, 0.25
    %v275 = vmul.f32 %v245, 0.25
    %v276 = vmul.f32 %v246, 0.25
    %v277 = vmul.f32 %v247, 0.25
    %v278 = vmul.f32 %v248, 0.25
    %v279 = vmul.f32 %v249, 0.25
    %280 = vst [vmem:[#allocation5] sm:$0xff] %v250
    %281 = vst [vmem:[#allocation5 + $0x8] sm:$0x7f] %v251
    %282 = vst [vmem:[#allocation5 + $0x10] sm:$0xff] %v252
    %283 = vst [vmem:[#allocation5 + $0x18] sm:$0x7f] %v253
    %284 = vst [vmem:[#allocation5 + $0x20] sm:$0xff] %v254
    %285 = vst [vmem:[#allocation5 + $0x28] sm:$0x7f] %v255
    %286 = vst [vmem:[#allocation5 + $0x30] sm:$0xff] %v256
    %287 = vst [vmem:[#allocation5 + $0x38] sm:$0x7f] %v257
    %288 = vst [vmem:[#allocation5 + $0x40] sm:$0xff] %v258
    %289 = vst [vmem:[#allocation5 + $0x48] sm:$0x7f] %v259
    %290 = vst [vmem:[#allocation5 + $0x50] sm:$0xff] %v260
    %291 = vst [vmem:[#allocation5 + $0x58] sm:$0x7f] %v261
    %292 = vst [vmem:[#allocation5 + $0x60] sm:$0xff] %v262
    %293 = vst [vmem:[#allocation5 + $0x68] sm:$0x7f] %v263
    %294 = vst [vmem:[#allocation5 + $0x70] sm:$0xff] %v264
    %295 = vst [vmem:[#allocation5 + $0x78] sm:$0x7f] %v265
    %296 = vst [vmem:[#allocation5 + $0x80] sm:$0xff] %v266
    %297 = vst [vmem:[#allocation5 + $0x88] sm:$0x7f] %v267
    %298 = vst [vmem:[#allocation5 + $0x90] sm:$0xff] %v268
    %299 = vst [vmem:[#allocation5 + $0x98] sm:$0x7f] %v269
    %300 = vst [vmem:[#allocation5 + $0xa0] sm:$0xff] %v270
    %301 = vst [vmem:[#allocation5 + $0xa8] sm:$0x7f] %v271
    %302 = vst [vmem:[#allocation5 + $0xb0] sm:$0xff] %v272
    %303 = vst [vmem:[#allocation5 + $0xb8] sm:$0x7f] %v273
    %304 = vst [vmem:[#allocation5 + $0xc0] sm:$0xff] %v274
    %305 = vst [vmem:[#allocation5 + $0xc8] sm:$0x7f] %v275
    %306 = vst [vmem:[#allocation5 + $0xd0] sm:$0xff] %v276
    %307 = vst [vmem:[#allocation5 + $0xd8] sm:$0x7f] %v277
    %308 = vst [vmem:[#allocation5 + $0xe0] sm:$0xff] %v278
    %309 = vst [vmem:[#allocation5 + $0xe8] sm:$0x7f] %v279
    // Predicated region
    $region10: #{tpu_custom_call.1} parent=1 // pred_check
      _
    $region11: #{tpu_custom_call.1} parent=1 // pred_check_branch
      %311 = sbr.rel (0) target = $region13
    $region12: #{tpu_custom_call.1} parent=1 // pred_region
      %s313 = ssub.s32 3840, 3840
      %314 = vsyncadd [#allocation4], %s313
      %s315 = sshll.u32 [#allocation5], 4
      %s316 = int_to_ptr.vmem [resolvable:$true] %s315
      %321 = dma.vmem_to_hbm [thread:$0]  %s316, 3840, %s1, [#allocation4], 128, 128, 8
    $region13: #{tpu_custom_call.1} parent=1 // pred_fallthru
      _
    // Predicated region
    $region14: #{tpu_custom_call.1} parent=1 // pred_check
      _
    $region15: #{tpu_custom_call.1} parent=1 // pred_check_branch
      %323 = sbr.rel (0) target = $region17
    $region16: #{tpu_custom_call.1} parent=1 // pred_region
      %324 = dma.done [#allocation4], 3840
    $region17: #{tpu_custom_call.1} parent=1 // pred_fallthru
      _
    %325 = vsyncpa [#allocation3], 1
    %326 = vsyncpa [#allocation4], 1

</llo_original>
